<compile_context>
chip_gen: v7x
topology: tpu7x:2x2x1
jax: 0.10.0
libtpu: 0.0.40
codegen_flags: <defaults>
</compile_context>

<pallas_src>
import math

import jax
import jax.numpy as jnp
from jax.experimental import pallas as pl
from jax.experimental.pallas import tpu as pltpu


def _round_up(a, b):
    return (a + b - 1) // b * b


def _tpu_generation():
    """Best-effort TPU generation (e.g. 5, 6, 7) from device_kind; None if unknown."""
    try:
        kind = jax.devices()[0].device_kind.lower()
    except Exception:
        return None
    for g in (7, 6, 5, 4, 3, 2):
        if f"v{g}" in kind:
            return g
    return None


def _make_kernel(*, k, H, W, masked, ragged, total_rows, sx, sy):
    """Kernel over a (r_block, k*W) folded block; k is 1 or H (trace-time const)."""
    hk = H // k            # folded rows per plane
    L = k * W              # lane width of the folded layout

    def kernel(*refs):
        if masked:
            f_ref, m_ref, out_ref, wx_ref, wy_ref, acc_ref, accm_ref = refs
        else:
            f_ref, out_ref, wx_ref, wy_ref, acc_ref = refs
            m_ref = accm_ref = None

        c = pl.program_id(0)
        i = pl.program_id(1)
        R = f_ref.shape[0]

        # ---- one-time (per sweep) init: constant weights + accumulators ----
        @pl.when(i == 0)
        def _init():
            lane = jax.lax.broadcasted_iota(jnp.int32, (1, L), 1)
            # x-weight: zero on the last column of each plane row, otherwise
            # pre-scaled by 1/(H*(W-1)) so the wrapper only divides by NC.
            wx_ref[...] = jnp.where((lane % W) != (W - 1),
                                    jnp.float32(sx), jnp.float32(0.0))
            if k == 1:
                row = jax.lax.broadcasted_iota(jnp.int32, (R, 1), 0)
                wy_ref[...] = jnp.where((row % hk) != (hk - 1),
                                        jnp.float32(sy), jnp.float32(0.0))
            else:
                wy_ref[...] = jnp.where(lane < (H - 1) * W,
                                        jnp.float32(sy), jnp.float32(0.0))
            acc_ref[...] = jnp.zeros_like(acc_ref)
            if masked:
                accm_ref[...] = jnp.zeros_like(accm_ref)

        f = f_ref[...].astype(jnp.float32)
        m = m_ref[...].astype(jnp.float32) if masked else None

        if ragged:
            # Zero rows beyond the true plane count (partial / repeated tail
            # blocks).  Use a select, not a multiply, so OOB garbage (possibly
            # NaN/Inf) can never leak into the sums.
            blk = c * pl.num_programs(1) + i
            remaining = total_rows - blk * R
            row = jax.lax.broadcasted_iota(jnp.int32, (R, 1), 0)
            rowvalid = row < remaining
            f = jnp.where(rowvalid, f, 0.0)
            if masked:
                m = jnp.where(rowvalid, m, 0.0)

        # Finite differences as lane/sublane rotations (XLU); boundaries are
        # handled entirely by the precomputed zero weights.
        right = pltpu.roll(f, L - 1, axis=1)            # out[l] = f[l + 1]
        if k == 1:
            below = pltpu.roll(f, R - 1, axis=0)        # out[r] = f[r + 1]
        else:
            below = pltpu.roll(f, L - W, axis=1)        # out[l] = f[l + W]

        contrib = (jnp.abs(f - right) * wx_ref[...]
                   + jnp.abs(f - below) * wy_ref[...])
        if masked:
            contrib = contrib * m
            accm_ref[...] += jnp.sum(m, axis=0, keepdims=True)
        acc_ref[...] += jnp.sum(contrib, axis=0, keepdims=True)

        @pl.when(i == pl.num_programs(1) - 1)
        def _finalize():
            sg = jnp.sum(acc_ref[...])
            sm = jnp.sum(accm_ref[...]) if masked else jnp.float32(0.0)
            slot = jax.lax.broadcasted_iota(jnp.int32, (1, 8, 128), 1)
            out_ref[...] = jnp.where(
                slot == 0, sg, jnp.where(slot == 1, sm, 0.0)).astype(jnp.float32)

    return kernel


def smoothness_loss(flows, mask=None, *, target_block_bytes=None):
    """Pallas TPU implementation of SmoothnessLoss.forward (NCHW flows)."""
    N, C, H, W = flows.shape
    NC = N * C
    masked = mask is not None
    if masked and mask.dtype == jnp.bool_:
        mask = mask.astype(flows.dtype)   # rare; otherwise stream native dtype

    gen = _tpu_generation()
    # 2 output blocks / split plane loop only where there are 2 TensorCores.
    splits = 2 if (gen is not None and gen >= 7) else 1
    if target_block_bytes is None:
        # v6e/v7x: larger blocks amortize the ~0.35us/step fixed cost at high
        # HBM bandwidth; v5e (or unknown) stays at 4 MiB.
        target_block_bytes = (8 << 20) if (gen is not None and gen >= 6) else (4 << 20)

    f_isz = flows.dtype.itemsize
    m_isz = mask.dtype.itemsize if masked else 0
    plane_bytes = H * W * (f_isz + m_isz)

    # ---- folded layout -----------------------------------------------------
    # k = H: whole plane -> one lane-dense row of H*W lanes.
    # k = 1: plane rows on sublanes, W on lanes (fallback).
    if (H * W) % 128 == 0 and 8 * H * W * f_isz <= (2 << 20):
        k = H
    else:
        k = 1
    hk = H // k
    L = k * W
    total_rows = NC * hk

    # ---- tile sizing (no wrapper-side padding; ragged tail masked in-kernel)
    sub_q = 16 if (f_isz < 4 or (masked and m_isz < 4)) else 8
    tb = max(1, target_block_bytes // plane_bytes)       # planes per block
    tb = min(tb, pl.cdiv(NC, splits))
    step = sub_q // math.gcd(hk, sub_q)                  # keep r_block % sub_q
    tb = _round_up(tb, step)
    if splits == 1 and tb >= NC:
        tb = NC                       # single full-extent block (always legal)
    r_block = tb * hk
    nb_total = pl.cdiv(NC, tb)                  # real blocks of folded rows
    nb2 = pl.cdiv(nb_total, splits)             # inner grid length
    ragged = (splits * nb2 * tb) != NC

    # Normalizers folded into the weights (wrapper only divides by NC).
    # Degenerate H == 1 / W == 1 give empty gradients -> weight 0.
    sx = 1.0 / (H * (W - 1)) if W > 1 else 0.0
    sy = 1.0 / ((H - 1) * W) if H > 1 else 0.0

    # ---- fold: free contiguous reshape, no pad, no dtype cast --------------
    inputs = [flows.reshape(total_rows, L)]
    if masked:
        inputs.append(mask.reshape(total_rows, L))

    if ragged:
        def block_map(c_, i_):
            return (jnp.minimum(c_ * nb2 + i_, nb_total - 1), 0)
    else:
        def block_map(c_, i_):
            return (c_ * nb2 + i_, 0)

    in_specs = [pl.BlockSpec((r_block, L), block_map) for _ in inputs]

    wy_shape = (r_block, 1) if k == 1 else (1, L)
    scratch = [pltpu.VMEM((1, L), jnp.float32),       # wx weight
               pltpu.VMEM(wy_shape, jnp.float32),     # wy weight
               pltpu.VMEM((1, L), jnp.float32)]       # gradient accumulator
    if masked:
        scratch.append(pltpu.VMEM((1, L), jnp.float32))   # mask-sum accumulator

    flow_blk = r_block * L * f_isz
    mask_blk = r_block * L * m_isz
    vmem_limit = 2 * (flow_blk + mask_blk) + (4 << 20)
    vmem_limit = max(vmem_limit, 32 << 20)
    vmem_limit = min(vmem_limit,
                     (48 << 20) if (gen is None or gen >= 7) else (100 << 20))

    out = pl.pallas_call(
        _make_kernel(k=k, H=H, W=W, masked=masked, ragged=ragged,
                     total_rows=total_rows, sx=sx, sy=sy),
        out_shape=jax.ShapeDtypeStruct((splits, 8, 128), jnp.float32),
        grid_spec=pltpu.PrefetchScalarGridSpec(
            num_scalar_prefetch=0,
            grid=(splits, nb2),
            in_specs=in_specs,
            out_specs=pl.BlockSpec((1, 8, 128), lambda c_, i_: (c_, 0, 0)),
            scratch_shapes=scratch,
        ),
        compiler_params=pltpu.CompilerParams(
            dimension_semantics=("parallel", "arbitrary"),
            vmem_limit_bytes=int(vmem_limit)),
    )(*inputs)

    loss = jnp.sum(out[:, 0, 0]) / jnp.float32(NC)
    if masked:
        normalize = jnp.sum(out[:, 1, 0]) / jnp.float32(NC * H * W)
        loss = loss / normalize
    return loss


# -------------------- reference (pure JAX) --------------------

def smoothness_loss_ref(flows, mask=None):
    gradx = jnp.abs(flows[:, :, :, :-1] - flows[:, :, :, 1:])
    grady = jnp.abs(flows[:, :, :-1, :] - flows[:, :, 1:, :])
    normalize = 1.0
    if mask is not None:
        gradx = gradx * mask[:, :, :, :-1]
        grady = grady * mask[:, :, :-1, :]
        normalize = jnp.mean(mask)
    return (jnp.mean(gradx) + jnp.mean(grady)) / normalize


if __name__ == "__main__":
    key = jax.random.PRNGKey(0)
    k1, k2, k3, k4 = jax.random.split(key, 4)

    # --- lane-dense folded path (k == H), the module's typical small usage --
    N, C, H, W = 2, 4, 16, 16
    flows = jax.random.normal(k1, (N, C, H, W), dtype=jnp.float32)
    mask = (jax.random.uniform(k2, (N, C, H, W)) > 0.3).astype(jnp.float32)

    out = jax.block_until_ready(smoothness_loss(flows))
    ref = smoothness_loss_ref(flows)
    assert jnp.allclose(out, ref, rtol=1e-5, atol=1e-6), (out, ref)

    out_m = jax.block_until_ready(smoothness_loss(flows, mask))
    ref_m = smoothness_loss_ref(flows, mask)
    assert jnp.allclose(out_m, ref_m, rtol=1e-5, atol=1e-6), (out_m, ref_m)

    # --- multi-step grid with a ragged plane-count tail (forced small blocks)
    N2, C2 = 3, 4
    flows2 = jax.random.normal(k3, (N2, C2, H, W), dtype=jnp.float32)
    mask2 = (jax.random.uniform(k4, (N2, C2, H, W)) > 0.5).astype(jnp.float32)

    out2 = jax.block_until_ready(
        smoothness_loss(flows2, target_block_bytes=8 * 1024))
    ref2 = smoothness_loss_ref(flows2)
    assert jnp.allclose(out2, ref2, rtol=1e-5, atol=1e-6), (out2, ref2)

    out2_m = jax.block_until_ready(
        smoothness_loss(flows2, mask2, target_block_bytes=8 * 1024))
    ref2_m = smoothness_loss_ref(flows2, mask2)
    assert jnp.allclose(out2_m, ref2_m, rtol=1e-5, atol=1e-6), (out2_m, ref2_m)

    print("KERNEL_OK")
</pallas_src>

<mosaic_0001>
module attributes {stable_mosaic.version = 11 : i64} {
  func.func @kernel(%arg0: i32, %arg1: i32, %arg2: memref<8x256xf32, #tpu.memory_space<vmem>>, %arg3: memref<1x8x128xf32, #tpu.memory_space<vmem>>, %arg4: memref<1x256xf32, #tpu.memory_space<vmem>>, %arg5: memref<1x256xf32, #tpu.memory_space<vmem>>, %arg6: memref<1x256xf32, #tpu.memory_space<vmem>>) attributes {dimension_semantics = [#tpu.dimension_semantics<parallel>, #tpu.dimension_semantics<arbitrary>], iteration_bounds = array<i64: 1, 1>, scalar_prefetch = 0 : i64, scratch_operands = 3 : i64, tpu.core_type = #tpu.core_type<tc>, window_params = [{transform_indices = @transform_0, window_bounds = array<i64: 8, 256>}, {transform_indices = @transform_1, window_bounds = array<i64: 1, 8, 128>}]} {
    %c0_i32 = arith.constant 0 : i32
    %0 = arith.cmpi eq, %arg1, %c0_i32 : i32
    %1 = arith.extui %0 : i1 to i32
    %c0_i32_0 = arith.constant 0 : i32
    %2 = arith.cmpi ne, %1, %c0_i32_0 : i32
    scf.if %2 {
      %25 = tpu.iota {dimensions = array<i32: 1>} : vector<1x256xi32>
      %c16_i32 = arith.constant 16 : i32
      %c0_i32_12 = arith.constant 0 : i32
      %26 = arith.cmpi eq, %c16_i32, %c0_i32_12 : i32
      %c1_i32 = arith.constant 1 : i32
      %27 = arith.select %26, %c1_i32, %c16_i32 : i32
      %28 = vector.broadcast %27 : i32 to vector<1x256xi32>
      %29 = arith.remsi %25, %28 : vector<1x256xi32>
      %c0_i32_13 = arith.constant 0 : i32
      %30 = vector.broadcast %c0_i32_13 : i32 to vector<1x256xi32>
      %31 = arith.cmpi ne, %29, %30 : vector<1x256xi32>
      %c0_i32_14 = arith.constant 0 : i32
      %32 = vector.broadcast %c0_i32_14 : i32 to vector<1x256xi32>
      %33 = arith.cmpi slt, %29, %32 : vector<1x256xi32>
      %c0_i32_15 = arith.constant 0 : i32
      %34 = arith.cmpi slt, %27, %c0_i32_15 : i32
      %35 = vector.broadcast %34 : i1 to vector<1x256xi1>
      %36 = vector.broadcast %35 : vector<1x256xi1> to vector<1x256xi1>
      %37 = arith.xori %33, %36 : vector<1x256xi1>
      %38 = arith.andi %37, %31 : vector<1x256xi1>
      %39 = vector.broadcast %27 : i32 to vector<1x256xi32>
      %40 = arith.addi %29, %39 : vector<1x256xi32>
      %41 = arith.select %38, %40, %29 : vector<1x256xi1>, vector<1x256xi32>
      %c15_i32 = arith.constant 15 : i32
      %42 = vector.broadcast %c15_i32 : i32 to vector<1x256xi32>
      %43 = arith.cmpi ne, %41, %42 : vector<1x256xi32>
      %cst_16 = arith.constant 0.00416666688 : f32
      %cst_17 = arith.constant 0.000000e+00 : f32
      %44 = vector.broadcast %cst_16 : f32 to vector<1x256xf32>
      %45 = vector.broadcast %cst_17 : f32 to vector<1x256xf32>
      %46 = arith.select %43, %44, %45 : vector<1x256xi1>, vector<1x256xf32>
      %c0_18 = arith.constant 0 : index
      %c0_19 = arith.constant 0 : index
      %47 = vector.load %arg4[%c0_18, %c0_19] : memref<1x256xf32, #tpu.memory_space<vmem>>, vector<1x256xf32>
      tpu.vector_store %arg4[%c0_18, %c0_19], %46 {strides = array<i32>} : memref<1x256xf32, #tpu.memory_space<vmem>>, vector<1x256xf32>,
      %c240_i32_20 = arith.constant 240 : i32
      %48 = vector.broadcast %c240_i32_20 : i32 to vector<1x256xi32>
      %49 = arith.cmpi slt, %25, %48 : vector<1x256xi32>
      %cst_21 = arith.constant 0.00416666688 : f32
      %cst_22 = arith.constant 0.000000e+00 : f32
      %50 = vector.broadcast %cst_21 : f32 to vector<1x256xf32>
      %51 = vector.broadcast %cst_22 : f32 to vector<1x256xf32>
      %52 = arith.select %49, %50, %51 : vector<1x256xi1>, vector<1x256xf32>
      %c0_23 = arith.constant 0 : index
      %c0_24 = arith.constant 0 : index
      %53 = vector.load %arg5[%c0_23, %c0_24] : memref<1x256xf32, #tpu.memory_space<vmem>>, vector<1x256xf32>
      tpu.vector_store %arg5[%c0_23, %c0_24], %52 {strides = array<i32>} : memref<1x256xf32, #tpu.memory_space<vmem>>, vector<1x256xf32>,
      %cst_25 = arith.constant 0.000000e+00 : f32
      %54 = vector.broadcast %cst_25 : f32 to vector<1x256xf32>
      %c0_26 = arith.constant 0 : index
      %c0_27 = arith.constant 0 : index
      %55 = vector.load %arg6[%c0_26, %c0_27] : memref<1x256xf32, #tpu.memory_space<vmem>>, vector<1x256xf32>
      tpu.vector_store %arg6[%c0_26, %c0_27], %54 {strides = array<i32>} : memref<1x256xf32, #tpu.memory_space<vmem>>, vector<1x256xf32>,
    } else {
    }
    %c0 = arith.constant 0 : index
    %c0_1 = arith.constant 0 : index
    %3 = vector.load %arg2[%c0, %c0_1] : memref<8x256xf32, #tpu.memory_space<vmem>>, vector<8x256xf32>
    %c255_i32 = arith.constant 255 : i32
    %4 = tpu.dynamic_rotate %3 by %c255_i32 dim 1 : vector<8x256xf32>, i32 -> vector<8x256xf32>
    %c240_i32 = arith.constant 240 : i32
    %5 = tpu.dynamic_rotate %3 by %c240_i32 dim 1 : vector<8x256xf32>, i32 -> vector<8x256xf32>
    %6 = arith.subf %3, %4 : vector<8x256xf32>
    %7 = math.absf %6 : vector<8x256xf32>
    %c0_2 = arith.constant 0 : index
    %c0_3 = arith.constant 0 : index
    %8 = vector.load %arg4[%c0_2, %c0_3] : memref<1x256xf32, #tpu.memory_space<vmem>>, vector<1x256xf32>
    %9 = vector.broadcast %8 : vector<1x256xf32> to vector<8x256xf32>
    %10 = arith.mulf %7, %9 : vector<8x256xf32>
    %11 = arith.subf %3, %5 : vector<8x256xf32>
    %12 = math.absf %11 : vector<8x256xf32>
    %c0_4 = arith.constant 0 : index
    %c0_5 = arith.constant 0 : index
    %13 = vector.load %arg5[%c0_4, %c0_5] : memref<1x256xf32, #tpu.memory_space<vmem>>, vector<1x256xf32>
    %14 = vector.broadcast %13 : vector<1x256xf32> to vector<8x256xf32>
    %15 = arith.mulf %12, %14 : vector<8x256xf32>
    %16 = arith.addf %10, %15 : vector<8x256xf32>
    %c0_6 = arith.constant 0 : index
    %c0_7 = arith.constant 0 : index
    %17 = vector.load %arg6[%c0_6, %c0_7] : memref<1x256xf32, #tpu.memory_space<vmem>>, vector<1x256xf32>
    %cst = arith.constant dense<0.000000e+00> : vector<256xf32>
    %18 = vector.multi_reduction <add>, %16, %cst [0] : vector<8x256xf32> to vector<256xf32>
    %19 = vector.shape_cast %18 : vector<256xf32> to vector<1x256xf32>
    %20 = arith.addf %17, %19 : vector<1x256xf32>
    %c0_8 = arith.constant 0 : index
    %c0_9 = arith.constant 0 : index
    %21 = vector.load %arg6[%c0_8, %c0_9] : memref<1x256xf32, #tpu.memory_space<vmem>>, vector<1x256xf32>
    tpu.vector_store %arg6[%c0_8, %c0_9], %20 {strides = array<i32>} : memref<1x256xf32, #tpu.memory_space<vmem>>, vector<1x256xf32>,
    %c0_i32_10 = arith.constant 0 : i32
    %22 = arith.cmpi eq, %arg1, %c0_i32_10 : i32
    %23 = arith.extui %22 : i1 to i32
    %c0_i32_11 = arith.constant 0 : i32
    %24 = arith.cmpi ne, %23, %c0_i32_11 : i32
    scf.if %24 {
      %c0_12 = arith.constant 0 : index
      %c0_13 = arith.constant 0 : index
      %25 = vector.load %arg6[%c0_12, %c0_13] : memref<1x256xf32, #tpu.memory_space<vmem>>, vector<1x256xf32>
      %26 = vector.shape_cast %25 : vector<1x256xf32> to vector<1x1x256xf32>
      %cst_14 = arith.constant dense<0.000000e+00> : vector<1xf32>
      %27 = vector.multi_reduction <add>, %26, %cst_14 [1, 2] : vector<1x1x256xf32> to vector<1xf32>
      %28 = vector.shape_cast %27 : vector<1xf32> to vector<1x1x1xf32>
      %29 = vector.extract %28[0, 0, 0] : f32 from vector<1x1x1xf32>
      %30 = tpu.iota {dimensions = array<i32: 1>} : vector<1x8x128xi32>
      %c0_i32_15 = arith.constant 0 : i32
      %31 = vector.broadcast %c0_i32_15 : i32 to vector<1x8x128xi32>
      %32 = arith.cmpi eq, %30, %31 : vector<1x8x128xi32>
      %c1_i32 = arith.constant 1 : i32
      %33 = vector.broadcast %c1_i32 : i32 to vector<1x8x128xi32>
      %34 = arith.cmpi eq, %30, %33 : vector<1x8x128xi32>
      %cst_16 = arith.constant 0.000000e+00 : f32
      %cst_17 = arith.constant 0.000000e+00 : f32
      %35 = vector.broadcast %cst_16 : f32 to vector<1x8x128xf32>
      %36 = vector.broadcast %cst_17 : f32 to vector<1x8x128xf32>
      %37 = arith.select %34, %35, %36 : vector<1x8x128xi1>, vector<1x8x128xf32>
      %38 = vector.broadcast %29 : f32 to vector<1x8x128xf32>
      %39 = arith.select %32, %38, %37 : vector<1x8x128xi1>, vector<1x8x128xf32>
      %c0_18 = arith.constant 0 : index
      %c0_19 = arith.constant 0 : index
      %c0_20 = arith.constant 0 : index
      %40 = vector.load %arg3[%c0_18, %c0_19, %c0_20] : memref<1x8x128xf32, #tpu.memory_space<vmem>>, vector<1x8x128xf32>
      tpu.vector_store %arg3[%c0_18, %c0_19, %c0_20], %39 {strides = array<i32>} : memref<1x8x128xf32, #tpu.memory_space<vmem>>, vector<1x8x128xf32>,
    } else {
    }
    return
  }
  func.func @transform_0(%arg0: i32, %arg1: i32) -> (i32, i32) {
    %c1_i32 = arith.constant 1 : i32
    %0 = arith.muli %arg0, %c1_i32 : i32
    %1 = arith.addi %0, %arg1 : i32
    %c0_i32 = arith.constant 0 : i32
    %c0_i32_0 = arith.constant 0 : i32
    return %1, %c0_i32 : i32, i32
  }
  func.func @transform_1(%arg0: i32, %arg1: i32) -> (i32, i32, i32) {
    %c0_i32 = arith.constant 0 : i32
    %c0_i32_0 = arith.constant 0 : i32
    %c0_i32_1 = arith.constant 0 : i32
    return %arg0, %c0_i32, %c0_i32_0 : i32, i32, i32
  }
}

</mosaic_0001>

<llo_original>
// kernel: tpu_custom_call.1
$region0: #{tpu_custom_call.1}
  #allocation0 [shape = 'u32[]', space=smem, size = 0x4, offset = 0x4, fixed_abs, tag = 'smem constant byte address 0x4 - core index']
  #allocation1 [shape = 'u32[144,128]{1,0:T(1,128)}', space=vmem, size = 0x12000, scoped, tag = 'internal scratch']
  #allocation2 [shape = 'f32[1,256]{1,0:T(1,128)}', space=vmem, size = 0x400, scoped, tag = 'scratch operand']
  #allocation3 [shape = 'f32[1,256]{1,0:T(1,128)}', space=vmem, size = 0x400, scoped, tag = 'scratch operand']
  #allocation4 [shape = 'f32[1,256]{1,0:T(1,128)}', space=vmem, size = 0x400, scoped, tag = 'scratch operand']
  %s0 = inlined_call_operand.hbm [shape: f32[8,256], index: 0, kind: input, shape index: {}]
  %s1 = inlined_call_operand.hbm [shape: f32[1,8,128], index: 1, kind: output, shape index: {}]
  %s2 = sld [smem:[#allocation0]]
  $region26: #{tpu_custom_call.1} parent=0
    _
  %s4 = ssub.s32 1, %s2
  %s5 = scalar_select 0, %s4, %s2
  $region1: #{tpu_custom_call.1} parent=0
    #allocation5 [shape = 'u8[8192]{0}', space=vmem, size = 0x2000, scoped, tag = 'input window, operand 0, single buffered']
    #allocation6 [shape = 's32[1]{0}', space=sflag, size = 0x4, scoped, tag = 'scoped memory for tpu_custom_call.1']
    #allocation7 [shape = 's32[1]{0}', space=sflag, size = 0x4, scoped, tag = 'scoped memory for tpu_custom_call.1']
    #allocation8 [shape = 'u8[4096]{0}', space=vmem, size = 0x1000, scoped, tag = 'output window, operand 0, single buffered']
    %6 = vsyncpa [#allocation6], 0
    %7 = vsyncpa [#allocation7], 0
    // Predicated region
    $region2: #{tpu_custom_call.1} parent=1 // pred_check
      _
    $region3: #{tpu_custom_call.1} parent=1 // pred_check_branch
      %9 = sbr.rel (0) target = $region5
    $region4: #{tpu_custom_call.1} parent=1 // pred_region
      %s10 = sadd.s32 0, 0
      %s12 = ssub.s32 256, 256
      %13 = vsyncadd [#allocation6], %s12
      %s14 = smul.addr %s10, 2
      %s15 = smul.addr %s14, 128
      %s16 = scalar_lea.hbm %s0, %s15
      %s18 = sshll.u32 [#allocation5], 4
      %s19 = int_to_ptr.vmem [resolvable:$true] %s18
      %21 = dma.hbm_to_vmem [thread:$0]  %s16, 256, %s19, [#allocation6]
    $region5: #{tpu_custom_call.1} parent=1 // pred_fallthru
      _
    // Predicated region
    $region6: #{tpu_custom_call.1} parent=1 // pred_check
      _
    $region7: #{tpu_custom_call.1} parent=1 // pred_check_branch
      %23 = sbr.rel (0) target = $region9
    $region8: #{tpu_custom_call.1} parent=1 // pred_region
      %24 = dma.done [#allocation6], 256
    $region9: #{tpu_custom_call.1} parent=1 // pred_fallthru
      _
    %s25 = sadd.s32 0, 0
    %p26 = scmp.eq.s32.totalorder 0, 0
    // Predicated region
    $region10: #{tpu_custom_call.1} parent=1 // pred_check
      %p27 = pneg %p26
    $region11: #{tpu_custom_call.1} parent=1 // pred_check_branch
      %29 = sbr.rel (%p27) target = $region13
    $region12: #{tpu_custom_call.1} parent=1 // pred_region
      %v30 = vlaneseq
      %v31 = vand.u32 %v30, 127
      %v32 = vadd.s32 %v31, 128
      %vm33 = vcmp.lt.s32.totalorder %v31, 0
      %v34 = vsub.s32 0, %v31
      %v35 = vsel %vm33, %v34, %v31
      %v36 = vshrl.u32 %v35, 4
      %v37 = vand.u32 %v35, 15
      %v38 = vsub.s32 0, %v37
      %v39 = vsel %vm33, %v38, %v37
      %vm40 = vcmp.lt.s32.totalorder %v32, 0
      %v41 = vsub.s32 0, %v32
      %v42 = vsel %vm40, %v41, %v32
      %v43 = vshrl.u32 %v42, 4
      %v44 = vand.u32 %v42, 15
      %v45 = vsub.s32 0, %v44
      %v46 = vsel %vm40, %v45, %v44
      %vm47 = vcmp.ne.s32.totalorder %v39, 0
      %vm48 = vcmp.ne.s32.totalorder %v46, 0
      %vm49 = vcmp.lt.s32.totalorder %v39, 0
      %vm50 = vcmp.lt.s32.totalorder %v46, 0
      %vm51 = vmand %vm49, %vm47
      %vm52 = vmand %vm50, %vm48
      %v53 = vadd.s32 %v39, 16
      %v54 = vadd.s32 %v46, 16
      %v55 = vsel %vm51, %v53, %v39
      %v56 = vsel %vm52, %v54, %v46
      %vm57 = vcmp.ne.s32.totalorder %v55, 15
      %vm58 = vcmp.ne.s32.totalorder %v56, 15
      %v59 = vsel %vm57, 0.004166667, 0.0
      %v60 = vsel %vm58, 0.004166667, 0.0
      %v63 = vcombine.low %v59, %v60
      %v65 = vunpack.c.l.s4 1966171168
      %v66 = vunpack.c.0.s8 %v65
      %v67 = vlaneseq
      %v68 = vshrl.u32 %v67, 7
      %v69 = vsub.s32 %v66, %v68
      %v70 = vrot.slane %v63, %v69
      %v72 = vunpack.c.l.s4 1966171168
      %v73 = vunpack.c.0.s8 %v72
      %v74 = vlaneseq
      %v75 = vshrl.u32 %v74, 7
      %v76 = vsub.s32 %v73, %v75
      %v77 = vrot.slane %v70, %v76
      %v79 = vlaneseq
      %vm80 = vcmp.ge.s32.totalorder %v79, 0
      %vm81 = vcmp.lt.s32.totalorder %v79, 256
      %vm82 = vmand %vm80, %vm81
      %83 = vst.msk [vmem:[#allocation2] sm:$0x3] %vm82, %v77
      %vm84 = vcmp.lt.s32.totalorder %v31, 240
      %vm85 = vcmp.lt.s32.totalorder %v32, 240
      %v86 = vsel %vm84, 0.004166667, 0.0
      %v87 = vsel %vm85, 0.004166667, 0.0
      %v90 = vcombine.low %v86, %v87
      %v92 = vunpack.c.l.s4 1966171168
      %v93 = vunpack.c.0.s8 %v92
      %v94 = vlaneseq
      %v95 = vshrl.u32 %v94, 7
      %v96 = vsub.s32 %v93, %v95
      %v97 = vrot.slane %v90, %v96
      %v99 = vunpack.c.l.s4 1966171168
      %v100 = vunpack.c.0.s8 %v99
      %v101 = vlaneseq
      %v102 = vshrl.u32 %v101, 7
      %v103 = vsub.s32 %v100, %v102
      %v104 = vrot.slane %v97, %v103
      %106 = vst.msk [vmem:[#allocation3] sm:$0x3] %vm82, %v104
      %107 = vst.msk [vmem:[#allocation4] sm:$0x3] %vm82, 0.0
    $region13: #{tpu_custom_call.1} parent=1 // pred_fallthru
      _
    %v108 = vld [vmem:[#allocation5] sm:$0xff]
    %v109 = vld [vmem:[#allocation5 + $0x8] sm:$0xff]
    %110 = vrot.lane.b32.xlu0 %v108, 127
    %v111 = vpop.permute.xlu0 %110
    %112 = vrot.lane.b32.xlu0 %v109, 127
    %v113 = vpop.permute.xlu0 %112
    %v114 = vlaneseq
    %v115 = vand.u32 %v114, 127
    %vm116 = vcmp.lt.s32.totalorder %v115, 127
    %v117 = vsel %vm116, %v111, %v113
    %v118 = vsel %vm116, %v113, %v111
    %119 = vrot.lane.b32.xlu0 %v108, 112
    %v120 = vpop.permute.xlu0 %119
    %121 = vrot.lane.b32.xlu0 %v109, 112
    %v122 = vpop.permute.xlu0 %121
    %vm123 = vcmp.lt.s32.totalorder %v115, 112
    %v124 = vsel %vm123, %v120, %v122
    %v125 = vsel %vm123, %v122, %v120
    %v126 = vsub.f32 %v108, %v117
    %v127 = vsub.f32 %v109, %v118
    %v128 = vand.u32 2147483647, %v126
    %v129 = vand.u32 2147483647, %v127
    %v130 = vld [vmem:[#allocation2] sm:$0x3]
    %v132 = vlaneseq
    %v133 = vshrl.u32 %v132, 7
    %v134 = vsub.s32 0, %v133
    %v135 = vrot.slane %v130, %v134
    %v136 = vlaneseq
    %v137 = vshrl.u32 %v136, 7
    %v138 = vsub.s32 1, %v137
    %v139 = vrot.slane %v130, %v138
    %v142 = vmul.f32 %v128, %v135
    %v143 = vmul.f32 %v129, %v139
    %v144 = vsub.f32 %v108, %v124
    %v145 = vsub.f32 %v109, %v125
    %v146 = vand.u32 2147483647, %v144
    %v147 = vand.u32 2147483647, %v145
    %v148 = vld [vmem:[#allocation3] sm:$0x3]
    %v150 = vlaneseq
    %v151 = vshrl.u32 %v150, 7
    %v152 = vsub.s32 0, %v151
    %v153 = vrot.slane %v148, %v152
    %v154 = vlaneseq
    %v155 = vshrl.u32 %v154, 7
    %v156 = vsub.s32 1, %v155
    %v157 = vrot.slane %v148, %v156
    %v160 = vmul.f32 %v146, %v153
    %v161 = vmul.f32 %v147, %v157
    %v162 = vadd.f32 %v142, %v160
    %v163 = vadd.f32 %v143, %v161
    %v164 = vld [vmem:[#allocation4] sm:$0x3]
    %v165 = vrot.slane %v162, 4
    %v166 = vadd.f32 %v162, %v165
    %v167 = vrot.slane %v166, 2
    %v168 = vadd.f32 %v166, %v167
    %v169 = vrot.slane %v168, 1
    %v170 = vadd.f32 %v168, %v169
    %v171 = vrot.slane %v163, 4
    %v172 = vadd.f32 %v163, %v171
    %v173 = vrot.slane %v172, 2
    %v174 = vadd.f32 %v172, %v173
    %v175 = vrot.slane %v174, 1
    %v176 = vadd.f32 %v174, %v175
    %v179 = vcombine.low %v170, %v176
    %v181 = vunpack.c.l.s4 1966171168
    %v182 = vunpack.c.0.s8 %v181
    %v183 = vlaneseq
    %v184 = vshrl.u32 %v183, 7
    %v185 = vsub.s32 %v182, %v184
    %v186 = vrot.slane %v179, %v185
    %v188 = vunpack.c.l.s4 1966171168
    %v189 = vunpack.c.0.s8 %v188
    %v190 = vlaneseq
    %v191 = vshrl.u32 %v190, 7
    %v192 = vsub.s32 %v189, %v191
    %v193 = vrot.slane %v186, %v192
    %v195 = vadd.f32 %v164, %v193
    %v196 = vlaneseq
    %vm197 = vcmp.ge.s32.totalorder %v196, 0
    %vm198 = vcmp.lt.s32.totalorder %v196, 256
    %vm199 = vmand %vm197, %vm198
    %200 = vst.msk [vmem:[#allocation4] sm:$0x3] %vm199, %v195
    // Predicated region
    $region14: #{tpu_custom_call.1} parent=1 // pred_check
      %p201 = pneg %p26
    $region15: #{tpu_custom_call.1} parent=1 // pred_check_branch
      %203 = sbr.rel (%p201) target = $region17
    $region16: #{tpu_custom_call.1} parent=1 // pred_region
      %v204 = vld [vmem:[#allocation4] sm:$0x3]
      %v206 = vlaneseq
      %v207 = vshrl.u32 %v206, 7
      %v208 = vsub.s32 0, %v207
      %v209 = vrot.slane %v204, %v208
      %v210 = vlaneseq
      %v211 = vshrl.u32 %v210, 7
      %v212 = vsub.s32 1, %v211
      %v213 = vrot.slane %v204, %v212
      %vm216 = vcmask 1040384
      %v217 = vsel %vm216, %v209, 0.0
      %v218 = vsel %vm216, %v213, 0.0
      %v219 = vadd.f32 %v217, %v218
      %220 = vadd.xlane.f32.xlu0 %v219
      %v221 = vpop.xlane.xlu0 %220
      %v222 = vrot.slane %v221, 4
      %v223 = vadd.f32 %v221, %v222
      %v224 = vrot.slane %v223, 2
      %v225 = vadd.f32 %v223, %v224
      %v226 = vrot.slane %v225, 1
      %v227 = vadd.f32 %v225, %v226
      %s228 = vtos %v227
      %v229 = vlaneseq
      %v230 = vshrl.u32 %v229, 7
      %vm231 = vcmp.eq.s32.totalorder %v230, 0
      %v232 = vstv %s228
      %v233 = vsel %vm231, %v232, 0.0
      %234 = vst [vmem:[#allocation8] sm:$0xff] %v233
    $region17: #{tpu_custom_call.1} parent=1 // pred_fallthru
      _
    // Predicated region
    $region18: #{tpu_custom_call.1} parent=1 // pred_check
      _
    $region19: #{tpu_custom_call.1} parent=1 // pred_check_branch
      %236 = sbr.rel (0) target = $region21
    $region20: #{tpu_custom_call.1} parent=1 // pred_region
      %s238 = ssub.s32 128, 128
      %239 = vsyncadd [#allocation7], %s238
      %s241 = sshll.u32 [#allocation8], 4
      %s242 = int_to_ptr.vmem [resolvable:$true] %s241
      %244 = dma.vmem_to_hbm [thread:$0]  %s242, 128, %s1, [#allocation7]
    $region21: #{tpu_custom_call.1} parent=1 // pred_fallthru
      _
    // Predicated region
    $region22: #{tpu_custom_call.1} parent=1 // pred_check
      _
    $region23: #{tpu_custom_call.1} parent=1 // pred_check_branch
      %246 = sbr.rel (0) target = $region25
    $region24: #{tpu_custom_call.1} parent=1 // pred_region
      %247 = dma.done [#allocation7], 128
    $region25: #{tpu_custom_call.1} parent=1 // pred_fallthru
      _
    %248 = vsyncpa [#allocation6], 1
    %249 = vsyncpa [#allocation7], 1

</llo_original>
